<compile_context>
chip_gen: v7x
topology: tpu7x:2x2x1
jax: 0.10.0
libtpu: 0.0.40
codegen_flags: <defaults>
</compile_context>

<pallas_src>
import jax
import jax.numpy as jnp
from jax.experimental import pallas as pl
from jax.experimental.pallas import tpu as pltpu


def qnet_kernel(x_ref, w1_ref, b1_ref, w2_ref, b2_ref, out_ref):
    """Fused two-layer MLP on one batch tile: relu(x@w1+b1)@w2+b2."""
    x = x_ref[...]
    w1 = w1_ref[...]
    w2 = w2_ref[...]

    # If weights were pre-cast to bf16 (throughput mode), feed the MXU bf16
    # inputs; always accumulate in f32 and keep bias add / relu in f32.
    if x.dtype != w1.dtype:
        x = x.astype(w1.dtype)

    # fc1: (TB, D) @ (D, H) + (1, H) -> relu   (f32 accumulate + f32 tail)
    h = jnp.dot(x, w1, preferred_element_type=jnp.float32) + b1_ref[...]
    h = jnp.maximum(h, 0.0)
    if h.dtype != w2.dtype:
        h = h.astype(w2.dtype)

    # fc2: (TB, H) @ (H, A) + (1, A)
    y = jnp.dot(h, w2, preferred_element_type=jnp.float32) + b2_ref[...]
    out_ref[...] = y.astype(out_ref.dtype)


def linear_qnet_forward(state, w1, b1, w2, b2, *, block_b=8192,
                        gridless_max_b=32768, mxu_dtype=None):
    """state: (B, D); w1: (D, H); b1: (H,); w2: (H, A); b2: (A,) -> (B, A) f32.

    block_b / gridless_max_b: the kernel footprint is KB-to-MB scale on every
    generation (x tile = block_b*D*4 B), so tile choice is driven purely by
    amortizing the ~0.35 us per-grid-step overhead, not by VMEM — hence the
    large defaults.  For B > gridless_max_b the grid has >= 2 "parallel"
    batch blocks, which also lets v7x use both TensorCores.
    """
    B, D = state.shape
    H = w1.shape[1]
    A = w2.shape[1]

    if mxu_dtype is not None:
        # Cast the tiny, VMEM-resident weights once here (not per grid step).
        w1 = w1.astype(mxu_dtype)
        w2 = w2.astype(mxu_dtype)
    b1_2d = b1.reshape(1, H).astype(jnp.float32)
    b2_2d = b2.reshape(1, A).astype(jnp.float32)

    if B <= gridless_max_b:
        # Single invocation, no grid, no pipeline scaffolding: every operand is
        # one full-array block resident in VMEM (x at B=32768 is only 2 MiB).
        return pl.pallas_call(
            qnet_kernel,
            out_shape=jax.ShapeDtypeStruct((B, A), jnp.float32),
            in_specs=[pl.BlockSpec(memory_space=pltpu.MemorySpace.VMEM)] * 5,
            out_specs=pl.BlockSpec(memory_space=pltpu.MemorySpace.VMEM),
        )(state, w1, b1_2d, w2, b2_2d)

    # Very large batch: tile only the batch axis with big blocks.  Weights and
    # biases have constant index_maps, so they are DMA'd once and stay resident
    # across grid steps.  No wrapper pad/slice: the ragged last block's
    # out-of-range rows are computed independently and their writes discarded.
    n_blocks = pl.cdiv(B, block_b)
    return pl.pallas_call(
        qnet_kernel,
        out_shape=jax.ShapeDtypeStruct((B, A), jnp.float32),
        grid=(n_blocks,),
        in_specs=[
            pl.BlockSpec((block_b, D), lambda i: (i, 0)),  # state: tiled on batch
            pl.BlockSpec((D, H), lambda i: (0, 0)),        # w1: resident
            pl.BlockSpec((1, H), lambda i: (0, 0)),        # b1: resident
            pl.BlockSpec((H, A), lambda i: (0, 0)),        # w2: resident
            pl.BlockSpec((1, A), lambda i: (0, 0)),        # b2: resident
        ],
        out_specs=pl.BlockSpec((block_b, A), lambda i: (i, 0)),
        compiler_params=pltpu.CompilerParams(
            # Independent batch tiles: lets v7x shard the grid across its 2 TCs.
            dimension_semantics=("parallel",),
        ),
    )(state, w1, b1_2d, w2, b2_2d)


def init_params(key, input_dims, hidden_dim, n_actions):
    """Deterministic init mimicking nn.Linear's U(-1/sqrt(fan_in), 1/sqrt(fan_in)).

    Weights stored pre-transposed as (in, out) for the kernel.
    """
    k1, k2, k3, k4 = jax.random.split(key, 4)
    bound1 = 1.0 / jnp.sqrt(jnp.float32(input_dims))
    bound2 = 1.0 / jnp.sqrt(jnp.float32(hidden_dim))
    w1 = jax.random.uniform(k1, (input_dims, hidden_dim), jnp.float32,
                            minval=-bound1, maxval=bound1)
    b1 = jax.random.uniform(k2, (hidden_dim,), jnp.float32,
                            minval=-bound1, maxval=bound1)
    w2 = jax.random.uniform(k3, (hidden_dim, n_actions), jnp.float32,
                            minval=-bound2, maxval=bound2)
    b2 = jax.random.uniform(k4, (n_actions,), jnp.float32,
                            minval=-bound2, maxval=bound2)
    return w1, b1, w2, b2


if __name__ == "__main__":
    input_dims, hidden_dim, n_actions = 16, 32, 4

    key = jax.random.PRNGKey(0)
    k_params, k_small, k_big = jax.random.split(key, 3)
    w1, b1, w2, b2 = init_params(k_params, input_dims, hidden_dim, n_actions)

    def ref_forward(x):
        return jnp.maximum(x @ w1 + b1, 0.0) @ w2 + b2

    # --- Small batch (RL inference): gridless, fully VMEM-resident. ---
    state_small = jax.random.normal(k_small, (8, input_dims), jnp.float32)
    out_small = jax.block_until_ready(
        linear_qnet_forward(state_small, w1, b1, w2, b2))
    assert out_small.shape == (8, n_actions)
    assert jnp.allclose(out_small, ref_forward(state_small), atol=1e-5, rtol=1e-5)

    # --- Replay-buffer-sized batch: still gridless by default (B <= 32768). ---
    state_big = jax.random.normal(k_big, (1000, input_dims), jnp.float32)
    out_big = jax.block_until_ready(
        linear_qnet_forward(state_big, w1, b1, w2, b2))
    assert out_big.shape == (1000, n_actions)
    assert jnp.allclose(out_big, ref_forward(state_big), atol=1e-5, rtol=1e-5)

    # --- Force the gridded path with a ragged last block (no pad/slice). ---
    out_grid = jax.block_until_ready(
        linear_qnet_forward(state_big, w1, b1, w2, b2,
                            block_b=512, gridless_max_b=0))
    assert out_grid.shape == (1000, n_actions)
    assert jnp.allclose(out_grid, ref_forward(state_big), atol=1e-5, rtol=1e-5)

    # --- bf16 MXU throughput mode (weights cast once in the wrapper). ---
    out_bf16 = jax.block_until_ready(
        linear_qnet_forward(state_big, w1, b1, w2, b2, mxu_dtype=jnp.bfloat16))
    assert out_bf16.shape == (1000, n_actions)
    assert jnp.allclose(out_bf16, ref_forward(state_big), atol=1e-1, rtol=5e-2)

    print("KERNEL_OK")
</pallas_src>

<mosaic_0001>
module attributes {stable_mosaic.version = 11 : i64} {
  func.func @qnet_kernel(%arg0: memref<8x16xf32, #tpu.memory_space<vmem>>, %arg1: memref<16x32xf32, #tpu.memory_space<vmem>>, %arg2: memref<1x32xf32, #tpu.memory_space<vmem>>, %arg3: memref<32x4xf32, #tpu.memory_space<vmem>>, %arg4: memref<1x4xf32, #tpu.memory_space<vmem>>, %arg5: memref<8x4xf32, #tpu.memory_space<vmem>>) attributes {dimension_semantics = [], scalar_prefetch = 0 : i64, scratch_operands = 0 : i64, tpu.core_type = #tpu.core_type<tc>} {
    %c0 = arith.constant 0 : index
    %c0_0 = arith.constant 0 : index
    %0 = vector.load %arg0[%c0, %c0_0] : memref<8x16xf32, #tpu.memory_space<vmem>>, vector<8x16xf32>
    %c0_1 = arith.constant 0 : index
    %c0_2 = arith.constant 0 : index
    %1 = vector.load %arg1[%c0_1, %c0_2] : memref<16x32xf32, #tpu.memory_space<vmem>>, vector<16x32xf32>
    %c0_3 = arith.constant 0 : index
    %c0_4 = arith.constant 0 : index
    %2 = vector.load %arg3[%c0_3, %c0_4] : memref<32x4xf32, #tpu.memory_space<vmem>>, vector<32x4xf32>
    %cst = arith.constant dense<0.000000e+00> : vector<8x32xf32>
    %3 = tpu.matmul %0, %1, %cst {dimension_numbers = #tpu.dot_dimension_numbers<[1], [0], [0], [1], [0, 0, 1, 1], [], []>} : vector<8x16xf32>, vector<16x32xf32>, vector<8x32xf32> -> vector<8x32xf32>
    %c0_5 = arith.constant 0 : index
    %c0_6 = arith.constant 0 : index
    %4 = vector.load %arg2[%c0_5, %c0_6] : memref<1x32xf32, #tpu.memory_space<vmem>>, vector<1x32xf32>
    %5 = vector.broadcast %4 : vector<1x32xf32> to vector<8x32xf32>
    %6 = arith.addf %3, %5 : vector<8x32xf32>
    %cst_7 = arith.constant 0.000000e+00 : f32
    %7 = vector.broadcast %cst_7 : f32 to vector<8x32xf32>
    %8 = arith.maximumf %6, %7 : vector<8x32xf32>
    %cst_8 = arith.constant dense<0.000000e+00> : vector<8x4xf32>
    %9 = tpu.matmul %8, %2, %cst_8 {dimension_numbers = #tpu.dot_dimension_numbers<[1], [0], [0], [1], [0, 0, 1, 1], [], []>} : vector<8x32xf32>, vector<32x4xf32>, vector<8x4xf32> -> vector<8x4xf32>
    %c0_9 = arith.constant 0 : index
    %c0_10 = arith.constant 0 : index
    %10 = vector.load %arg4[%c0_9, %c0_10] : memref<1x4xf32, #tpu.memory_space<vmem>>, vector<1x4xf32>
    %11 = vector.broadcast %10 : vector<1x4xf32> to vector<8x4xf32>
    %12 = arith.addf %9, %11 : vector<8x4xf32>
    %c0_11 = arith.constant 0 : index
    %c0_12 = arith.constant 0 : index
    %13 = vector.load %arg5[%c0_11, %c0_12] : memref<8x4xf32, #tpu.memory_space<vmem>>, vector<8x4xf32>
    tpu.vector_store %arg5[%c0_11, %c0_12], %12 {strides = array<i32>} : memref<8x4xf32, #tpu.memory_space<vmem>>, vector<8x4xf32>,
    return
  }
}

</mosaic_0001>

<llo_original>
// kernel: tpu_custom_call.1
$region0: #{tpu_custom_call.1}
  #allocation0 [shape = 'u32[]', space=smem, size = 0x4, offset = 0x4, fixed_abs, tag = 'smem constant byte address 0x4 - core index']
  #allocation1 [shape = 'u32[144,128]{1,0:T(1,128)}', space=vmem, size = 0x12000, scoped, tag = 'internal scratch']
  %s0 = inlined_call_operand.vmem [shape: f32[8,16], index: 0, kind: input, shape index: {}]
  %s1 = inlined_call_operand.vmem [shape: f32[16,32], index: 1, kind: input, shape index: {}]
  %s2 = inlined_call_operand.vmem [shape: f32[1,32], index: 2, kind: input, shape index: {}]
  %s3 = inlined_call_operand.vmem [shape: f32[32,4], index: 3, kind: input, shape index: {}]
  %s4 = inlined_call_operand.vmem [shape: f32[1,4], index: 4, kind: input, shape index: {}]
  %s5 = inlined_call_operand.vmem [shape: f32[8,4], index: 5, kind: output, shape index: {}]
  %s6 = sld [smem:[#allocation0]]
  $region30: #{tpu_custom_call.1} parent=0
    _
  %s8 = ssub.s32 1, %s6
  %s9 = scalar_select 0, %s8, %s6
  // Predicated region
  $region2: #{tpu_custom_call.1} parent=0 // pred_check
    _
  $region3: #{tpu_custom_call.1} parent=0 // pred_check_branch
    %11 = sbr.rel (0) target = $region5
  $region4: #{tpu_custom_call.1} parent=0 // pred_region
    _
  $region5: #{tpu_custom_call.1} parent=0 // pred_fallthru
    _
  // Predicated region
  $region6: #{tpu_custom_call.1} parent=0 // pred_check
    _
  $region7: #{tpu_custom_call.1} parent=0 // pred_check_branch
    %13 = sbr.rel (0) target = $region9
  $region8: #{tpu_custom_call.1} parent=0 // pred_region
    _
  $region9: #{tpu_custom_call.1} parent=0 // pred_fallthru
    _
  // Predicated region
  $region10: #{tpu_custom_call.1} parent=0 // pred_check
    _
  $region11: #{tpu_custom_call.1} parent=0 // pred_check_branch
    %15 = sbr.rel (0) target = $region13
  $region12: #{tpu_custom_call.1} parent=0 // pred_region
    _
  $region13: #{tpu_custom_call.1} parent=0 // pred_fallthru
    _
  // Predicated region
  $region14: #{tpu_custom_call.1} parent=0 // pred_check
    _
  $region15: #{tpu_custom_call.1} parent=0 // pred_check_branch
    %17 = sbr.rel (0) target = $region17
  $region16: #{tpu_custom_call.1} parent=0 // pred_region
    _
  $region17: #{tpu_custom_call.1} parent=0 // pred_fallthru
    _
  // Predicated region
  $region18: #{tpu_custom_call.1} parent=0 // pred_check
    _
  $region19: #{tpu_custom_call.1} parent=0 // pred_check_branch
    %19 = sbr.rel (0) target = $region21
  $region20: #{tpu_custom_call.1} parent=0 // pred_region
    _
  $region21: #{tpu_custom_call.1} parent=0 // pred_fallthru
    _
  %v20 = vld [vmem:[%s0] sm:$0xff]
  %v21 = vld [vmem:[%s1] sm:$0xff]
  %v22 = vld [vmem:[%s1 + $0x8] sm:$0xff]
  %v23 = vld [vmem:[%s3] sm:$0xff]
  %v24 = vld [vmem:[%s3 + $0x8] sm:$0xff]
  %v25 = vld [vmem:[%s3 + $0x10] sm:$0xff]
  %v26 = vld [vmem:[%s3 + $0x18] sm:$0xff]
  %v27 = vld [vmem:[%s2] sm:$0x1]
  %v29 = vlaneseq
  %v30 = vshrl.u32 %v29, 7
  %v31 = vsub.s32 0, %v30
  %v32 = vrot.slane %v27, %v31
  %vm34 = vcmask 130048
  %v36 = vsel %vm34, %v20, 0
  %38 = vmatprep.subr.mxu0 0.0
  %39 = vmatpush1.msra.mxu0 %v21
  %40 = vmatprep.subr.mxu0 0.0
  %41 = vmatpush1.msra.mxu0 %v22
  %42 = vmatprep.subr.mxu0 0.0
  %43 = vmatpush1.msra.mxu0 0.0
  %44 = vmatprep.subr.mxu0 0.0
  %45 = vmatpush1.msra.mxu0 0.0
  %46 = vmatprep.subr.mxu0 0.0
  %47 = vmatpush1.msra.mxu0 0.0
  %48 = vmatprep.subr.mxu0 0.0
  %49 = vmatpush1.msra.mxu0 0.0
  %50 = vmatprep.subr.mxu0 0.0
  %51 = vmatpush1.msra.mxu0 0.0
  %52 = vmatprep.subr.mxu0 0.0
  %53 = vmatpush1.msra.mxu0 0.0
  %54 = vmatprep.subr.mxu0 0.0
  %55 = vmatpush1.msra.mxu0 0.0
  %56 = vmatprep.subr.mxu0 0.0
  %57 = vmatpush1.msra.mxu0 0.0
  %58 = vmatprep.subr.mxu0 0.0
  %59 = vmatpush1.msra.mxu0 0.0
  %60 = vmatprep.subr.mxu0 0.0
  %61 = vmatpush1.msra.mxu0 0.0
  %62 = vmatprep.subr.mxu0 0.0
  %63 = vmatpush1.msra.mxu0 0.0
  %64 = vmatprep.subr.mxu0 0.0
  %65 = vmatpush1.msra.mxu0 0.0
  %66 = vmatprep.subr.mxu0 0.0
  %67 = vmatpush1.msra.mxu0 0.0
  %68 = vmatprep.subr.mxu0 0.0
  %69 = vmatpush1.msra.mxu0 0.0
  %70 = vmatprep.subr.mxu0 0.0
  %71 = vmatpush1.msra.mxu0 0.0
  %72 = vmatprep.subr.mxu0 0.0
  %73 = vmatpush1.msra.mxu0 0.0
  %74 = vmatprep.subr.mxu0 0.0
  %75 = vmatpush1.msra.mxu0 0.0
  %76 = vmatprep.subr.mxu0 0.0
  %77 = vmatpush1.msra.mxu0 0.0
  %78 = vmatprep.subr.mxu0 0.0
  %79 = vmatpush1.msra.mxu0 0.0
  %80 = vmatprep.subr.mxu0 0.0
  %81 = vmatpush1.msra.mxu0 0.0
  %82 = vmatprep.subr.mxu0 0.0
  %83 = vmatpush1.msra.mxu0 0.0
  %84 = vmatprep.subr.mxu0 0.0
  %85 = vmatpush1.msra.mxu0 0.0
  %86 = vmatprep.subr.mxu0 0.0
  %87 = vmatpush1.msra.mxu0 0.0
  %88 = vmatprep.subr.mxu0 0.0
  %89 = vmatpush1.msra.mxu0 0.0
  %90 = vmatprep.subr.mxu0 0.0
  %91 = vmatpush1.msra.mxu0 0.0
  %92 = vmatprep.subr.mxu0 0.0
  %93 = vmatpush1.msra.mxu0 0.0
  %94 = vmatprep.subr.mxu0 0.0
  %95 = vmatpush1.msra.mxu0 0.0
  %96 = vmatprep.subr.mxu0 0.0
  %97 = vmatpush1.msra.mxu0 0.0
  %98 = vmatprep.subr.mxu0 0.0
  %99 = vmatpush1.msra.mxu0 0.0
  %100 = vmatprep.subr.mxu0 0.0
  %101 = vmatpush1.msra.mxu0 0.0
  %102 = vmatprep.mubr.f32.mxu0 0.0
  %103 = vmatmul.mubr.f32.gmra.mrb[0].mxu0 %v36
  %v104 = vpop.f32.mrb[0].mxu0
  %v105 = vadd.f32 %v32, %v104
  %v106 = vpop.f32.mrb[0].mxu0
  %107 = vdwg.mxu0
  %v108 = vmax.f32 %v105, 0.0
  %v109 = vld [vmem:[%s4] sm:$0x1]
  %v111 = vlaneseq
  %v112 = vshrl.u32 %v111, 7
  %v113 = vsub.s32 0, %v112
  %v114 = vrot.slane %v109, %v113
  %vm116 = vcmask 261120
  %v118 = vsel %vm116, %v108, 0
  %120 = vmatprep.subr.mxu0 0.0
  %121 = vmatpush1.msra.mxu0 %v23
  %122 = vmatprep.subr.mxu0 0.0
  %123 = vmatpush1.msra.mxu0 %v24
  %124 = vmatprep.subr.mxu0 0.0
  %125 = vmatpush1.msra.mxu0 %v25
  %126 = vmatprep.subr.mxu0 0.0
  %127 = vmatpush1.msra.mxu0 %v26
  %128 = vmatprep.subr.mxu0 0.0
  %129 = vmatpush1.msra.mxu0 0.0
  %130 = vmatprep.subr.mxu0 0.0
  %131 = vmatpush1.msra.mxu0 0.0
  %132 = vmatprep.subr.mxu0 0.0
  %133 = vmatpush1.msra.mxu0 0.0
  %134 = vmatprep.subr.mxu0 0.0
  %135 = vmatpush1.msra.mxu0 0.0
  %136 = vmatprep.subr.mxu0 0.0
  %137 = vmatpush1.msra.mxu0 0.0
  %138 = vmatprep.subr.mxu0 0.0
  %139 = vmatpush1.msra.mxu0 0.0
  %140 = vmatprep.subr.mxu0 0.0
  %141 = vmatpush1.msra.mxu0 0.0
  %142 = vmatprep.subr.mxu0 0.0
  %143 = vmatpush1.msra.mxu0 0.0
  %144 = vmatprep.subr.mxu0 0.0
  %145 = vmatpush1.msra.mxu0 0.0
  %146 = vmatprep.subr.mxu0 0.0
  %147 = vmatpush1.msra.mxu0 0.0
  %148 = vmatprep.subr.mxu0 0.0
  %149 = vmatpush1.msra.mxu0 0.0
  %150 = vmatprep.subr.mxu0 0.0
  %151 = vmatpush1.msra.mxu0 0.0
  %152 = vmatprep.subr.mxu0 0.0
  %153 = vmatpush1.msra.mxu0 0.0
  %154 = vmatprep.subr.mxu0 0.0
  %155 = vmatpush1.msra.mxu0 0.0
  %156 = vmatprep.subr.mxu0 0.0
  %157 = vmatpush1.msra.mxu0 0.0
  %158 = vmatprep.subr.mxu0 0.0
  %159 = vmatpush1.msra.mxu0 0.0
  %160 = vmatprep.subr.mxu0 0.0
  %161 = vmatpush1.msra.mxu0 0.0
  %162 = vmatprep.subr.mxu0 0.0
  %163 = vmatpush1.msra.mxu0 0.0
  %164 = vmatprep.subr.mxu0 0.0
  %165 = vmatpush1.msra.mxu0 0.0
  %166 = vmatprep.subr.mxu0 0.0
  %167 = vmatpush1.msra.mxu0 0.0
  %168 = vmatprep.subr.mxu0 0.0
  %169 = vmatpush1.msra.mxu0 0.0
  %170 = vmatprep.subr.mxu0 0.0
  %171 = vmatpush1.msra.mxu0 0.0
  %172 = vmatprep.subr.mxu0 0.0
  %173 = vmatpush1.msra.mxu0 0.0
  %174 = vmatprep.subr.mxu0 0.0
  %175 = vmatpush1.msra.mxu0 0.0
  %176 = vmatprep.subr.mxu0 0.0
  %177 = vmatpush1.msra.mxu0 0.0
  %178 = vmatprep.subr.mxu0 0.0
  %179 = vmatpush1.msra.mxu0 0.0
  %180 = vmatprep.subr.mxu0 0.0
  %181 = vmatpush1.msra.mxu0 0.0
  %182 = vmatprep.subr.mxu0 0.0
  %183 = vmatpush1.msra.mxu0 0.0
  %184 = vmatprep.mubr.f32.mxu0 0.0
  %185 = vmatmul.mubr.f32.gmra.mrb[0].mxu0 %v118
  %v186 = vpop.f32.mrb[0].mxu0
  %v187 = vadd.f32 %v114, %v186
  %v188 = vpop.f32.mrb[0].mxu0
  %189 = vdwg.mxu0
  %vm190 = vcmask 31744
  %191 = vst.msk [vmem:[%s5] sm:$0xff] %vm190, %v187
  // Predicated region
  $region22: #{tpu_custom_call.1} parent=0 // pred_check
    _
  $region23: #{tpu_custom_call.1} parent=0 // pred_check_branch
    %193 = sbr.rel (0) target = $region25
  $region24: #{tpu_custom_call.1} parent=0 // pred_region
    _
  $region25: #{tpu_custom_call.1} parent=0 // pred_fallthru
    _
  // Predicated region
  $region26: #{tpu_custom_call.1} parent=0 // pred_check
    _
  $region27: #{tpu_custom_call.1} parent=0 // pred_check_branch
    %195 = sbr.rel (0) target = $region29
  $region28: #{tpu_custom_call.1} parent=0 // pred_region
    _
  $region29: #{tpu_custom_call.1} parent=0 // pred_fallthru
    _

</llo_original>
